<compile_context>
chip_gen: v6e
topology: v6e:2x2x1
jax: 0.10.0
libtpu: 0.0.40
codegen_flags: <defaults>
</compile_context>

<pallas_src>
import functools

import jax
import jax.numpy as jnp
from jax.experimental import pallas as pl
from jax.experimental.pallas import tpu as pltpu

NUM_OBJECTIVES = 2
DROPOUT_RATE = 0.1
BN_EPS = 1e-5
LANES = 128          # TPU lane width; param slab / outputs are padded to this


def _bn_train(h, gamma, beta):
    """BatchNorm1d training mode: batch mean, biased variance (two-pass)."""
    mu = jnp.mean(h, axis=0, keepdims=True)
    d = h - mu
    var = jnp.mean(d * d, axis=0, keepdims=True)
    return d * jax.lax.rsqrt(var + BN_EPS) * gamma + beta


def rateres_kernel(x_ref, slab_ref, rnd_ref, out_ref, *, in_dim, H, HH):
    """One MC-dropout sample of the full forward pass.

    x_ref:    (B, in_dim)    input, resident across the sample grid
    slab_ref: (rows, 128)    packed parameters, resident across the sample grid
    rnd_ref:  (3, B, 128)    this sample's uniform[0,1) dropout randomness
    out_ref:  (B, 128)       lane-dense output tile: [mean | logvar | zero-pad]
    """
    # Static row offsets into the packed parameter slab (zero-cost slices).
    r_w1 = 0
    r_w2 = r_w1 + in_dim
    r_wh1 = r_w2 + H
    r_wh2 = r_wh1 + H
    r_vec = r_wh2 + HH

    x = x_ref[...]
    w1 = slab_ref[r_w1:r_w2, :H]
    w2 = slab_ref[r_w2:r_wh1, :H]            # pre-scaled by 1/(1-p)
    wh1 = slab_ref[r_wh1:r_wh2, :HH]          # fused heads L1, pre-scaled
    wh2 = slab_ref[r_wh2:r_vec, :]            # fused heads L2, pre-scaled, lane-padded
    g1 = slab_ref[r_vec + 0:r_vec + 1, :H]
    be1 = slab_ref[r_vec + 1:r_vec + 2, :H]
    g2 = slab_ref[r_vec + 2:r_vec + 3, :H]
    be2 = slab_ref[r_vec + 3:r_vec + 4, :H]
    bh1 = slab_ref[r_vec + 4:r_vec + 5, :HH]
    bh2 = slab_ref[r_vec + 5:r_vec + 6, :]    # lane-padded, NOT scaled

    u = rnd_ref[...]                          # (3, B, 128)

    def drop(h, u_s):
        # The 1/(1-p) rescale is folded into the downstream weight matrices.
        return jnp.where(u_s >= DROPOUT_RATE, h, 0.0)

    # encoder block 1 (Linear bias omitted: it cancels inside BatchNorm)
    h = jnp.dot(x, w1, preferred_element_type=jnp.float32)
    h = drop(jnp.maximum(_bn_train(h, g1, be1), 0.0), u[0, :, :H])

    # encoder block 2
    h = jnp.dot(h, w2, preferred_element_type=jnp.float32)
    feat = drop(jnp.maximum(_bn_train(h, g2, be2), 0.0), u[1, :, :H])

    # fused mean/logvar heads: concat first layer, block-diagonal second layer
    t = jnp.dot(feat, wh1, preferred_element_type=jnp.float32) + bh1
    t = drop(jnp.maximum(t, 0.0), u[2, :, :HH])

    # lane-dense (B, 128) store: [mean | logvar | zeros]
    out_ref[...] = jnp.dot(t, wh2, preferred_element_type=jnp.float32) + bh2


def rateres_forward(x, packed, key, num_samples=1):
    """Run `num_samples` MC-dropout forward passes in one pallas_call.

    Returns mean, logvar of shape (num_samples, B, NUM_OBJECTIVES).
    """
    slab, in_dim, H, hd2, nobj = packed
    B = x.shape[0]
    assert x.shape[1] == in_dim
    HH = 2 * hd2
    S = int(num_samples)

    # One uniform draw per sample, lane-aligned with the activations it masks.
    u = jax.random.uniform(key, (S, 3, B, LANES), jnp.float32)

    kernel = functools.partial(rateres_kernel, in_dim=in_dim, H=H, HH=HH)

    flops = 2 * B * (in_dim * H + H * H + H * HH + HH * LANES) * S
    bytes_accessed = 4 * (x.size + slab.size + u.size + S * B * LANES)

    out = pl.pallas_call(
        kernel,
        grid=(S,),
        in_specs=[
            # x and the param slab: constant block index -> DMA'd once, resident.
            pl.BlockSpec((B, in_dim), lambda s: (0, 0)),
            pl.BlockSpec(slab.shape, lambda s: (0, 0)),
            # per-sample dropout randomness
            pl.BlockSpec((None, 3, B, LANES), lambda s: (s, 0, 0, 0)),
        ],
        out_specs=pl.BlockSpec((None, B, LANES), lambda s: (s, 0, 0)),
        out_shape=jax.ShapeDtypeStruct((S, B, LANES), jnp.float32),
        compiler_params=pltpu.CompilerParams(
            dimension_semantics=("parallel",)),
        cost_estimate=pl.CostEstimate(flops=int(flops),
                                      transcendentals=int(2 * H * S),
                                      bytes_accessed=int(bytes_accessed)),
    )(x, slab, u)

    mean = out[:, :, :nobj]
    logvar = out[:, :, nobj:2 * nobj]
    return mean, logvar


# ---------------------------------------------------------------------------
# Parameter construction (PyTorch layout) and packing into one VMEM slab.
# ---------------------------------------------------------------------------

def make_params(key, input_dim, hidden_dim):
    """Deterministic synthetic parameters (shapes match the PyTorch module)."""
    hd2 = hidden_dim // 2
    ks = jax.random.split(key, 6)

    def lin(k, fan_in, fan_out):
        bound = 1.0 / jnp.sqrt(fan_in)
        kw, kb = jax.random.split(k)
        w = jax.random.uniform(kw, (fan_in, fan_out), jnp.float32, -bound, bound)
        b = jax.random.uniform(kb, (1, fan_out), jnp.float32, -bound, bound)
        return w, b

    w1, b1 = lin(ks[0], input_dim, hidden_dim)
    w2, b2 = lin(ks[1], hidden_dim, hidden_dim)
    wm1, bm1 = lin(ks[2], hidden_dim, hd2)
    wm2, bm2 = lin(ks[3], hd2, NUM_OBJECTIVES)
    wv1, bv1 = lin(ks[4], hidden_dim, hd2)
    wv2, bv2 = lin(ks[5], hd2, NUM_OBJECTIVES)
    # BatchNorm1d default affine params: gamma=1, beta=0
    g1 = jnp.ones((1, hidden_dim), jnp.float32)
    be1 = jnp.zeros((1, hidden_dim), jnp.float32)
    g2 = jnp.ones((1, hidden_dim), jnp.float32)
    be2 = jnp.zeros((1, hidden_dim), jnp.float32)
    return (w1, b1, g1, be1,
            w2, b2, g2, be2,
            wm1, bm1, wm2, bm2,
            wv1, bv1, wv2, bv2)


def pack_params(torch_params, p=DROPOUT_RATE):
    """Pack the 16 PyTorch-layout tensors into one lane-padded (rows, 128) slab."""
    (w1, b1, g1, be1, w2, b2, g2, be2,
     wm1, bm1, wm2, bm2, wv1, bv1, wv2, bv2) = torch_params
    in_dim, H = w1.shape
    hd2 = wm1.shape[1]
    nobj = wm2.shape[1]
    assert H <= LANES and 2 * hd2 <= LANES and 2 * nobj <= LANES
    scale = 1.0 / (1.0 - p)

    def pad_lanes(a):
        return jnp.pad(a, ((0, 0), (0, LANES - a.shape[1])))

    # Fused head layer 1: concat.  Fused head layer 2: block-diagonal.
    wh1 = jnp.concatenate([wm1, wv1], axis=1)                      # (H, 2*hd2)
    wh2 = jnp.zeros((2 * hd2, 2 * nobj), jnp.float32)
    wh2 = wh2.at[:hd2, :nobj].set(wm2).at[hd2:, nobj:].set(wv2)    # (2*hd2, 2*nobj)

    slab = jnp.concatenate([
        pad_lanes(w1),                       # rows [0, in_dim)
        pad_lanes(w2 * scale),               # dropout-1 rescale folded in
        pad_lanes(wh1 * scale),              # dropout-2 rescale folded in
        pad_lanes(wh2 * scale),              # dropout-3 rescale folded in
        pad_lanes(g1), pad_lanes(be1), pad_lanes(g2), pad_lanes(be2),
        pad_lanes(jnp.concatenate([bm1, bv1], axis=1)),
        pad_lanes(jnp.concatenate([bm2, bv2], axis=1)),  # bias: NOT scaled
    ], axis=0)
    # Encoder biases b1/b2 intentionally NOT packed: they cancel inside BN.
    return slab, in_dim, H, hd2, nobj


# ---------------------------------------------------------------------------
# Pure-JAX reference (uses the exact same uniform randomness as the kernel).
# ---------------------------------------------------------------------------

def reference_forward(x, torch_params, u, p=DROPOUT_RATE):
    (w1, b1, g1, be1, w2, b2, g2, be2,
     wm1, bm1, wm2, bm2, wv1, bv1, wv2, bv2) = torch_params
    H = w1.shape[1]
    hd2 = wm1.shape[1]

    def bn(h, g, b):
        mu = jnp.mean(h, axis=0, keepdims=True)
        var = jnp.mean((h - mu) ** 2, axis=0, keepdims=True)
        return (h - mu) / jnp.sqrt(var + BN_EPS) * g + b

    def drop(h, u_s):
        return jnp.where(u_s >= p, h / (1.0 - p), 0.0)

    h = drop(jnp.maximum(bn(x @ w1 + b1, g1, be1), 0.0), u[0, :, :H])
    feat = drop(jnp.maximum(bn(h @ w2 + b2, g2, be2), 0.0), u[1, :, :H])
    m = drop(jnp.maximum(feat @ wm1 + bm1, 0.0), u[2, :, :hd2])
    mean = m @ wm2 + bm2
    v = drop(jnp.maximum(feat @ wv1 + bv1, 0.0), u[2, :, hd2:2 * hd2])
    logvar = v @ wv2 + bv2
    return mean, logvar


if __name__ == "__main__":
    BATCH, INPUT_DIM, HIDDEN_DIM = 8, 16, 32
    MC_SAMPLES = 4

    key = jax.random.PRNGKey(0)
    kx, kp, kd = jax.random.split(key, 3)
    x = jax.random.normal(kx, (BATCH, INPUT_DIM), jnp.float32)
    torch_params = make_params(kp, INPUT_DIM, HIDDEN_DIM)
    packed = pack_params(torch_params)

    mean, logvar = rateres_forward(x, packed, kd, num_samples=MC_SAMPLES)
    jax.block_until_ready((mean, logvar))
    assert mean.shape == (MC_SAMPLES, BATCH, NUM_OBJECTIVES)
    assert logvar.shape == (MC_SAMPLES, BATCH, NUM_OBJECTIVES)
    assert bool(jnp.all(jnp.isfinite(mean)))
    assert bool(jnp.all(jnp.isfinite(logvar)))

    # Verify every MC sample against a pure-JAX reference using the exact same
    # uniform dropout randomness (same key / shape as drawn inside the wrapper).
    u = jax.random.uniform(kd, (MC_SAMPLES, 3, BATCH, LANES), jnp.float32)
    for s in range(MC_SAMPLES):
        ref_mean, ref_logvar = reference_forward(x, torch_params, u[s])
        assert jnp.allclose(mean[s], ref_mean, atol=2e-2, rtol=2e-2), s
        assert jnp.allclose(logvar[s], ref_logvar, atol=2e-2, rtol=2e-2), s

    # MC-dropout uncertainty aggregation (predict_with_uncertainty semantics).
    mean_pred = mean.mean(axis=0)
    total_var = jnp.exp(logvar.mean(axis=0)) + jnp.var(mean, axis=0)
    assert bool(jnp.all(jnp.isfinite(mean_pred)))
    assert bool(jnp.all(jnp.isfinite(total_var)))

    print("KERNEL_OK")
</pallas_src>

<mosaic_0001>
module attributes {stable_mosaic.version = 11 : i64} {
  func.func @rateres_kernel(%arg0: i32, %arg1: memref<8x16xf32, #tpu.memory_space<vmem>>, %arg2: memref<118x128xf32, #tpu.memory_space<vmem>>, %arg3: memref<1x3x8x128xf32, #tpu.memory_space<vmem>>, %arg4: memref<1x8x128xf32, #tpu.memory_space<vmem>>) attributes {dimension_semantics = [#tpu.dimension_semantics<parallel>], iteration_bounds = array<i64: 4>, scalar_prefetch = 0 : i64, scratch_operands = 0 : i64, tpu.core_type = #tpu.core_type<tc>, window_params = [{pipeline_mode = #tpu.pipeline_mode<synchronous>, transform_indices = @transform_0, window_bounds = array<i64: 8, 16>}, {pipeline_mode = #tpu.pipeline_mode<synchronous>, transform_indices = @transform_1, window_bounds = array<i64: 118, 128>}, {transform_indices = @transform_2, window_bounds = array<i64: 1, 3, 8, 128>}, {transform_indices = @transform_3, window_bounds = array<i64: 1, 8, 128>}]} {
    %c0 = arith.constant 0 : index
    %c0_0 = arith.constant 0 : index
    %0 = vector.load %arg1[%c0, %c0_0] : memref<8x16xf32, #tpu.memory_space<vmem>>, vector<8x16xf32>
    %c0_1 = arith.constant 0 : index
    %c0_2 = arith.constant 0 : index
    %1 = vector.load %arg2[%c0_1, %c0_2] : memref<118x128xf32, #tpu.memory_space<vmem>>, vector<16x32xf32>
    %c16 = arith.constant 16 : index
    %c0_3 = arith.constant 0 : index
    %2 = vector.load %arg2[%c16, %c0_3] : memref<118x128xf32, #tpu.memory_space<vmem>>, vector<32x32xf32>
    %c48 = arith.constant 48 : index
    %c0_4 = arith.constant 0 : index
    %3 = vector.load %arg2[%c48, %c0_4] : memref<118x128xf32, #tpu.memory_space<vmem>>, vector<32x32xf32>
    %c80 = arith.constant 80 : index
    %c0_5 = arith.constant 0 : index
    %4 = vector.load %arg2[%c80, %c0_5] : memref<118x128xf32, #tpu.memory_space<vmem>>, vector<32x128xf32>
    %c112 = arith.constant 112 : index
    %c0_6 = arith.constant 0 : index
    %5 = vector.load %arg2[%c112, %c0_6] : memref<118x128xf32, #tpu.memory_space<vmem>>, vector<1x32xf32>
    %c113 = arith.constant 113 : index
    %c0_7 = arith.constant 0 : index
    %6 = vector.load %arg2[%c113, %c0_7] : memref<118x128xf32, #tpu.memory_space<vmem>>, vector<1x32xf32>
    %c114 = arith.constant 114 : index
    %c0_8 = arith.constant 0 : index
    %7 = vector.load %arg2[%c114, %c0_8] : memref<118x128xf32, #tpu.memory_space<vmem>>, vector<1x32xf32>
    %c115 = arith.constant 115 : index
    %c0_9 = arith.constant 0 : index
    %8 = vector.load %arg2[%c115, %c0_9] : memref<118x128xf32, #tpu.memory_space<vmem>>, vector<1x32xf32>
    %c116 = arith.constant 116 : index
    %c0_10 = arith.constant 0 : index
    %9 = vector.load %arg2[%c116, %c0_10] : memref<118x128xf32, #tpu.memory_space<vmem>>, vector<1x32xf32>
    %c117 = arith.constant 117 : index
    %c0_11 = arith.constant 0 : index
    %10 = vector.load %arg2[%c117, %c0_11] : memref<118x128xf32, #tpu.memory_space<vmem>>, vector<1x128xf32>
    %c0_12 = arith.constant 0 : index
    %c0_13 = arith.constant 0 : index
    %c0_14 = arith.constant 0 : index
    %c0_15 = arith.constant 0 : index
    %11 = vector.load %arg3[%c0_12, %c0_13, %c0_14, %c0_15] : memref<1x3x8x128xf32, #tpu.memory_space<vmem>>, vector<1x3x8x128xf32>
    %12 = vector.shape_cast %11 : vector<1x3x8x128xf32> to vector<3x8x128xf32>
    %cst = arith.constant dense<0.000000e+00> : vector<8x32xf32>
    %13 = tpu.matmul %0, %1, %cst {dimension_numbers = #tpu.dot_dimension_numbers<[1], [0], [0], [1], [0, 0, 1, 1], [], []>} : vector<8x16xf32>, vector<16x32xf32>, vector<8x32xf32> -> vector<8x32xf32>
    %cst_16 = arith.constant dense<0.000000e+00> : vector<32xf32>
    %14 = vector.multi_reduction <add>, %13, %cst_16 [0] : vector<8x32xf32> to vector<32xf32>
    %15 = vector.shape_cast %14 : vector<32xf32> to vector<1x32xf32>
    %cst_17 = arith.constant 8.000000e+00 : f32
    %16 = vector.broadcast %cst_17 : f32 to vector<1x32xf32>
    %17 = arith.divf %15, %16 : vector<1x32xf32>
    %18 = vector.broadcast %17 : vector<1x32xf32> to vector<8x32xf32>
    %19 = arith.subf %13, %18 : vector<8x32xf32>
    %20 = arith.mulf %19, %19 : vector<8x32xf32>
    %cst_18 = arith.constant dense<0.000000e+00> : vector<32xf32>
    %21 = vector.multi_reduction <add>, %20, %cst_18 [0] : vector<8x32xf32> to vector<32xf32>
    %22 = vector.shape_cast %21 : vector<32xf32> to vector<1x32xf32>
    %cst_19 = arith.constant 8.000000e+00 : f32
    %23 = vector.broadcast %cst_19 : f32 to vector<1x32xf32>
    %24 = arith.divf %22, %23 : vector<1x32xf32>
    %cst_20 = arith.constant 9.99999974E-6 : f32
    %25 = vector.broadcast %cst_20 : f32 to vector<1x32xf32>
    %26 = arith.addf %24, %25 : vector<1x32xf32>
    %27 = math.rsqrt %26 : vector<1x32xf32>
    %28 = vector.broadcast %27 : vector<1x32xf32> to vector<8x32xf32>
    %29 = arith.mulf %19, %28 : vector<8x32xf32>
    %30 = vector.broadcast %5 : vector<1x32xf32> to vector<8x32xf32>
    %31 = arith.mulf %29, %30 : vector<8x32xf32>
    %32 = vector.broadcast %6 : vector<1x32xf32> to vector<8x32xf32>
    %33 = arith.addf %31, %32 : vector<8x32xf32>
    %cst_21 = arith.constant 0.000000e+00 : f32
    %34 = vector.broadcast %cst_21 : f32 to vector<8x32xf32>
    %35 = arith.maximumf %33, %34 : vector<8x32xf32>
    %36 = vector.extract_strided_slice %12 {offsets = [0, 0, 0], sizes = [1, 8, 32], strides = [1, 1, 1]} : vector<3x8x128xf32> to vector<1x8x32xf32>
    %37 = vector.shape_cast %36 : vector<1x8x32xf32> to vector<8x32xf32>
    %cst_22 = arith.constant 1.000000e-01 : f32
    %38 = vector.broadcast %cst_22 : f32 to vector<8x32xf32>
    %39 = arith.cmpf oge, %37, %38 : vector<8x32xf32>
    %cst_23 = arith.constant 0.000000e+00 : f32
    %40 = vector.broadcast %cst_23 : f32 to vector<8x32xf32>
    %41 = arith.select %39, %35, %40 : vector<8x32xi1>, vector<8x32xf32>
    %cst_24 = arith.constant dense<0.000000e+00> : vector<8x32xf32>
    %42 = tpu.matmul %41, %2, %cst_24 {dimension_numbers = #tpu.dot_dimension_numbers<[1], [0], [0], [1], [0, 0, 1, 1], [], []>} : vector<8x32xf32>, vector<32x32xf32>, vector<8x32xf32> -> vector<8x32xf32>
    %cst_25 = arith.constant dense<0.000000e+00> : vector<32xf32>
    %43 = vector.multi_reduction <add>, %42, %cst_25 [0] : vector<8x32xf32> to vector<32xf32>
    %44 = vector.shape_cast %43 : vector<32xf32> to vector<1x32xf32>
    %cst_26 = arith.constant 8.000000e+00 : f32
    %45 = vector.broadcast %cst_26 : f32 to vector<1x32xf32>
    %46 = arith.divf %44, %45 : vector<1x32xf32>
    %47 = vector.broadcast %46 : vector<1x32xf32> to vector<8x32xf32>
    %48 = arith.subf %42, %47 : vector<8x32xf32>
    %49 = arith.mulf %48, %48 : vector<8x32xf32>
    %cst_27 = arith.constant dense<0.000000e+00> : vector<32xf32>
    %50 = vector.multi_reduction <add>, %49, %cst_27 [0] : vector<8x32xf32> to vector<32xf32>
    %51 = vector.shape_cast %50 : vector<32xf32> to vector<1x32xf32>
    %cst_28 = arith.constant 8.000000e+00 : f32
    %52 = vector.broadcast %cst_28 : f32 to vector<1x32xf32>
    %53 = arith.divf %51, %52 : vector<1x32xf32>
    %cst_29 = arith.constant 9.99999974E-6 : f32
    %54 = vector.broadcast %cst_29 : f32 to vector<1x32xf32>
    %55 = arith.addf %53, %54 : vector<1x32xf32>
    %56 = math.rsqrt %55 : vector<1x32xf32>
    %57 = vector.broadcast %56 : vector<1x32xf32> to vector<8x32xf32>
    %58 = arith.mulf %48, %57 : vector<8x32xf32>
    %59 = vector.broadcast %7 : vector<1x32xf32> to vector<8x32xf32>
    %60 = arith.mulf %58, %59 : vector<8x32xf32>
    %61 = vector.broadcast %8 : vector<1x32xf32> to vector<8x32xf32>
    %62 = arith.addf %60, %61 : vector<8x32xf32>
    %cst_30 = arith.constant 0.000000e+00 : f32
    %63 = vector.broadcast %cst_30 : f32 to vector<8x32xf32>
    %64 = arith.maximumf %62, %63 : vector<8x32xf32>
    %65 = vector.extract_strided_slice %12 {offsets = [1, 0, 0], sizes = [1, 8, 32], strides = [1, 1, 1]} : vector<3x8x128xf32> to vector<1x8x32xf32>
    %66 = vector.shape_cast %65 : vector<1x8x32xf32> to vector<8x32xf32>
    %cst_31 = arith.constant 1.000000e-01 : f32
    %67 = vector.broadcast %cst_31 : f32 to vector<8x32xf32>
    %68 = arith.cmpf oge, %66, %67 : vector<8x32xf32>
    %cst_32 = arith.constant 0.000000e+00 : f32
    %69 = vector.broadcast %cst_32 : f32 to vector<8x32xf32>
    %70 = arith.select %68, %64, %69 : vector<8x32xi1>, vector<8x32xf32>
    %cst_33 = arith.constant dense<0.000000e+00> : vector<8x32xf32>
    %71 = tpu.matmul %70, %3, %cst_33 {dimension_numbers = #tpu.dot_dimension_numbers<[1], [0], [0], [1], [0, 0, 1, 1], [], []>} : vector<8x32xf32>, vector<32x32xf32>, vector<8x32xf32> -> vector<8x32xf32>
    %72 = vector.broadcast %9 : vector<1x32xf32> to vector<8x32xf32>
    %73 = arith.addf %71, %72 : vector<8x32xf32>
    %cst_34 = arith.constant 0.000000e+00 : f32
    %74 = vector.broadcast %cst_34 : f32 to vector<8x32xf32>
    %75 = arith.maximumf %73, %74 : vector<8x32xf32>
    %76 = vector.extract_strided_slice %12 {offsets = [2, 0, 0], sizes = [1, 8, 32], strides = [1, 1, 1]} : vector<3x8x128xf32> to vector<1x8x32xf32>
    %77 = vector.shape_cast %76 : vector<1x8x32xf32> to vector<8x32xf32>
    %cst_35 = arith.constant 1.000000e-01 : f32
    %78 = vector.broadcast %cst_35 : f32 to vector<8x32xf32>
    %79 = arith.cmpf oge, %77, %78 : vector<8x32xf32>
    %cst_36 = arith.constant 0.000000e+00 : f32
    %80 = vector.broadcast %cst_36 : f32 to vector<8x32xf32>
    %81 = arith.select %79, %75, %80 : vector<8x32xi1>, vector<8x32xf32>
    %cst_37 = arith.constant dense<0.000000e+00> : vector<8x128xf32>
    %82 = tpu.matmul %81, %4, %cst_37 {dimension_numbers = #tpu.dot_dimension_numbers<[1], [0], [0], [1], [0, 0, 1, 1], [], []>} : vector<8x32xf32>, vector<32x128xf32>, vector<8x128xf32> -> vector<8x128xf32>
    %83 = vector.broadcast %10 : vector<1x128xf32> to vector<8x128xf32>
    %84 = arith.addf %82, %83 : vector<8x128xf32>
    %c0_38 = arith.constant 0 : index
    %c0_39 = arith.constant 0 : index
    %c0_40 = arith.constant 0 : index
    %85 = vector.load %arg4[%c0_38, %c0_39, %c0_40] : memref<1x8x128xf32, #tpu.memory_space<vmem>>, vector<1x8x128xf32>
    %86 = vector.shape_cast %85 : vector<1x8x128xf32> to vector<8x128xf32>
    %87 = vector.shape_cast %84 : vector<8x128xf32> to vector<1x8x128xf32>
    tpu.vector_store %arg4[%c0_38, %c0_39, %c0_40], %87 {strides = array<i32>} : memref<1x8x128xf32, #tpu.memory_space<vmem>>, vector<1x8x128xf32>,
    return
  }
  func.func @transform_0(%arg0: i32) -> (i32, i32) {
    %c0_i32 = arith.constant 0 : i32
    %c0_i32_0 = arith.constant 0 : i32
    %c0_i32_1 = arith.constant 0 : i32
    return %c0_i32, %c0_i32_0 : i32, i32
  }
  func.func @transform_1(%arg0: i32) -> (i32, i32) {
    %c0_i32 = arith.constant 0 : i32
    %c0_i32_0 = arith.constant 0 : i32
    %c0_i32_1 = arith.constant 0 : i32
    return %c0_i32, %c0_i32_0 : i32, i32
  }
  func.func @transform_2(%arg0: i32) -> (i32, i32, i32, i32) {
    %c0_i32 = arith.constant 0 : i32
    %c0_i32_0 = arith.constant 0 : i32
    %c0_i32_1 = arith.constant 0 : i32
    %c0_i32_2 = arith.constant 0 : i32
    return %arg0, %c0_i32, %c0_i32_0, %c0_i32_1 : i32, i32, i32, i32
  }
  func.func @transform_3(%arg0: i32) -> (i32, i32, i32) {
    %c0_i32 = arith.constant 0 : i32
    %c0_i32_0 = arith.constant 0 : i32
    %c0_i32_1 = arith.constant 0 : i32
    return %arg0, %c0_i32, %c0_i32_0 : i32, i32, i32
  }
}

</mosaic_0001>

<llo_original>
// kernel: tpu_custom_call.1
$region0: #{tpu_custom_call.1}
  #allocation0 [shape = 'u32[]', space=smem, size = 0x4, offset = 0x4, fixed_abs, tag = 'smem constant byte address 0x4 - core index']
  #allocation1 [shape = 'u32[144,128]{1,0:T(1,128)}', space=vmem, size = 0x12000, scoped, tag = 'internal scratch']
  %s0 = inlined_call_operand.hbm [shape: f32[8,16], index: 0, kind: input, shape index: {}]
  %s1 = inlined_call_operand.hbm [shape: f32[118,128], index: 1, kind: input, shape index: {}]
  %s2 = inlined_call_operand.hbm [shape: f32[4,3,8,128], index: 2, kind: input, shape index: {}]
  %s3 = inlined_call_operand.hbm [shape: f32[4,8,128], index: 3, kind: output, shape index: {}]
  %s4 = sld [smem:[#allocation0]]
  $region57: #{tpu_custom_call.1} parent=0
    _
  %s6 = ssub.s32 1, %s4
  %s7 = scalar_select 0, %s6, %s4
  $region1: #{tpu_custom_call.1} parent=0
    #allocation2 [shape = 'u8[4096]{0}', space=vmem, size = 0x1000, scoped, tag = 'input window, operand 0, single buffered']
    #allocation3 [shape = 's32[2]{0}', space=sflag, size = 0x8, scoped, tag = 'scoped memory for tpu_custom_call.1']
    #allocation4 [shape = 's32[2]{0}', space=sflag, size = 0x8, scoped, tag = 'scoped memory for tpu_custom_call.1']
    #allocation5 [shape = 'u8[61440]{0}', space=vmem, size = 0xf000, scoped, tag = 'input window, operand 1, single buffered']
    #allocation6 [shape = 's32[1]{0}', space=sflag, size = 0x4, scoped, tag = 'scoped memory for tpu_custom_call.1']
    #allocation7 [shape = 'u8[24576]{0}', space=vmem, size = 0x6000, scoped, tag = 'input window, operand 2']
    #allocation8 [shape = 'u8[8192]{0}', space=vmem, size = 0x2000, scoped, tag = 'output window, operand 0']
    %8 = vsyncpa [#allocation3], 0
    %9 = vsyncpa [#allocation6], 0
    %10 = vsyncpa [#allocation4], 0
    %s11 = scalar_lea.sflag [#allocation4], 1
    %12 = vsyncpa %s11, 0
    loop: start=0, step=1, limit=6
    $region2: #{tpu_custom_call.1} parent=1 // loop_pre_header
      _
    $region3: #{tpu_custom_call.1} parent=1 // loop_header
      %s14 = sphi 0, %s18
      %p15 = scmp.ge.s32.totalorder %s14, 6
      %s22 = sphi 0, %s22
      %s24 = sphi 0, %s22
      %s25 = sphi 0, %s24
      %s39 = sphi 0, %s25
      %s43 = sphi 0, %s43
      %s45 = sphi 0, %s43
      %s46 = sphi 0, %s45
      %s60 = sphi 0, %s46
      %s66 = sphi 0, %s68
      %s69 = sphi 0, %s66
      %s70 = sphi 0, %s69
      %s86 = sphi 0, %s70
      %s92 = sphi 0, %s94
      %s95 = sphi 0, %s92
      %s96 = sphi 0, %s95
      %s112 = sphi 0, %s96
    $region4: #{tpu_custom_call.1} parent=1 // loop_header_branch
      %17 = sbr.rel (%p15) target = $region8
    $region5: #{tpu_custom_call.1} parent=1 // loop_body
      %s19 = ssub.s32 %s14, 1
      %s20 = ssub.s32 %s14, 2
      %s21 = sadd.s32 %s14, 1
      %s23 = sadd.s32 %s22, 1
      %p26 = scmp.eq.s32.totalorder %s14, 3
      %p27 = scmp.ne.s32.totalorder %s22, %s24
      %p28 = scmp.eq.s32.totalorder %s14, 0
      %p29 = por %p27, %p28
      %p30 = scmp.ne.s32.totalorder %s22, %s24
      %p31 = scmp.eq.s32.totalorder %s19, 3
      %p32 = por %p30, %p31
      %p33 = scmp.ne.s32.totalorder %s24, %s25
      %p34 = scmp.eq.s32.totalorder %s19, 0
      %p35 = por %p33, %p34
      %p36 = scmp.ne.s32.totalorder %s24, %s25
      %p37 = scmp.eq.s32.totalorder %s20, 3
      %p38 = por %p36, %p37
      %p40 = scmp.ne.s32.totalorder %s25, %s39
      %p41 = scmp.eq.s32.totalorder %s20, 0
      %p42 = por %p40, %p41
      %s44 = sadd.s32 %s43, 1
      %p47 = scmp.eq.s32.totalorder %s14, 3
      %p48 = scmp.ne.s32.totalorder %s43, %s45
      %p49 = scmp.eq.s32.totalorder %s14, 0
      %p50 = por %p48, %p49
      %p51 = scmp.ne.s32.totalorder %s43, %s45
      %p52 = scmp.eq.s32.totalorder %s19, 3
      %p53 = por %p51, %p52
      %p54 = scmp.ne.s32.totalorder %s45, %s46
      %p55 = scmp.eq.s32.totalorder %s19, 0
      %p56 = por %p54, %p55
      %p57 = scmp.ne.s32.totalorder %s45, %s46
      %p58 = scmp.eq.s32.totalorder %s20, 3
      %p59 = por %p57, %p58
      %p61 = scmp.ne.s32.totalorder %s46, %s60
      %p62 = scmp.eq.s32.totalorder %s20, 0
      %p63 = por %p61, %p62
      %s64 = ssub.s32 %s14, %s21
      %p65 = scmp.eq.s32.totalorder %s64, 0
      %s67 = sadd.s32 %s66, 1
      %s68 = scalar_select %p65, %s66, %s67
      %p71 = pneg %p65
      %p72 = scmp.eq.s32.totalorder %s14, 3
      %p73 = por %p71, %p72
      %p74 = scmp.ne.s32.totalorder %s66, %s69
      %p75 = scmp.eq.s32.totalorder %s14, 0
      %p76 = por %p74, %p75
      %p77 = scmp.ne.s32.totalorder %s66, %s69
      %p78 = scmp.eq.s32.totalorder %s19, 3
      %p79 = por %p77, %p78
      %p80 = scmp.ne.s32.totalorder %s69, %s70
      %p81 = scmp.eq.s32.totalorder %s19, 0
      %p82 = por %p80, %p81
      %p83 = scmp.ne.s32.totalorder %s69, %s70
      %p84 = scmp.eq.s32.totalorder %s20, 3
      %p85 = por %p83, %p84
      %p87 = scmp.ne.s32.totalorder %s70, %s86
      %p88 = scmp.eq.s32.totalorder %s20, 0
      %p89 = por %p87, %p88
      %s90 = ssub.s32 %s14, %s21
      %p91 = scmp.eq.s32.totalorder %s90, 0
      %s93 = sadd.s32 %s92, 1
      %s94 = scalar_select %p91, %s92, %s93
      %p97 = pneg %p91
      %p98 = scmp.eq.s32.totalorder %s14, 3
      %p99 = por %p97, %p98
      %p100 = scmp.ne.s32.totalorder %s92, %s95
      %p101 = scmp.eq.s32.totalorder %s14, 0
      %p102 = por %p100, %p101
      %p103 = scmp.ne.s32.totalorder %s92, %s95
      %p104 = scmp.eq.s32.totalorder %s19, 3
      %p105 = por %p103, %p104
      %p106 = scmp.ne.s32.totalorder %s95, %s96
      %p107 = scmp.eq.s32.totalorder %s19, 0
      %p108 = por %p106, %p107
      %p109 = scmp.ne.s32.totalorder %s95, %s96
      %p110 = scmp.eq.s32.totalorder %s20, 3
      %p111 = por %p109, %p110
      %p113 = scmp.ne.s32.totalorder %s96, %s112
      %p114 = scmp.eq.s32.totalorder %s20, 0
      %p115 = por %p113, %p114
      %p116 = scmp.le.s32.totalorder 1, %s14
      %p117 = scmp.lt.s32.totalorder %s14, 5
      %p118 = pnand %p116, %p117
      %p119 = pneg %p118
      // Predicated region
      $region9: #{tpu_custom_call.1} parent=5 // pred_check
        _
      $region10: #{tpu_custom_call.1} parent=5 // pred_check_branch
        %121 = sbr.rel (%p118) target = $region12
      $region11: #{tpu_custom_call.1} parent=5 // pred_region
        %s122 = ssub.s32 %s14, 1
        // Predicated region
        $region13: #{tpu_custom_call.1} parent=11 // pred_check
          %p123 = pneg %p35
        $region14: #{tpu_custom_call.1} parent=11 // pred_check_branch
          %125 = sbr.rel (%p123) target = $region16
        $region15: #{tpu_custom_call.1} parent=11 // pred_region
          %s127 = ssub.s32 128, 128
          %128 = vsyncadd [#allocation3], %s127
          %s130 = sshll.u32 [#allocation2], 4
          %s131 = int_to_ptr.vmem [resolvable:$true] %s130
          %133 = dma.hbm_to_vmem [thread:$0]  %s0, 128, %s131, [#allocation3]
        $region16: #{tpu_custom_call.1} parent=11 // pred_fallthru
          _
        // Predicated region
        $region17: #{tpu_custom_call.1} parent=11 // pred_check
          %p134 = pneg %p56
        $region18: #{tpu_custom_call.1} parent=11 // pred_check_branch
          %136 = sbr.rel (%p134) target = $region20
        $region19: #{tpu_custom_call.1} parent=11 // pred_region
          %s138 = ssub.s32 1920, 1920
          %139 = vsyncadd [#allocation6], %s138
          %s140 = sshll.u32 [#allocation5], 4
          %s141 = int_to_ptr.vmem [resolvable:$true] %s140
          %146 = dma.hbm_to_vmem [thread:$0]  %s1, 1920, %s141, [#allocation6], 128, 128, 8
        $region20: #{tpu_custom_call.1} parent=11 // pred_fallthru
          _
      $region12: #{tpu_custom_call.1} parent=5 // pred_fallthru
        _
      %p147 = scmp.lt.s32.totalorder %s14, 4
      // Predicated region
      $region21: #{tpu_custom_call.1} parent=5 // pred_check
        %p148 = pneg %p147
      $region22: #{tpu_custom_call.1} parent=5 // pred_check_branch
        %150 = sbr.rel (%p148) target = $region24
      $region23: #{tpu_custom_call.1} parent=5 // pred_region
        // Predicated region
        $region25: #{tpu_custom_call.1} parent=23 // pred_check
          %p151 = pneg %p76
        $region26: #{tpu_custom_call.1} parent=23 // pred_check_branch
          %153 = sbr.rel (%p151) target = $region28
        $region27: #{tpu_custom_call.1} parent=23 // pred_region
          %s154 = sand.u32 %s14, 1
          %s155 = scalar_lea.sflag [#allocation3], %s154
          %s156 = sand.u32 %s66, 1
          %s157 = smul.addr %s156, 24
          %s158 = scalar_lea.vmem [#allocation7], %s157
          %s160 = ssub.s32 384, 384
          %161 = vsyncadd %s155, %s160
          %s162 = smul.addr %s14, 3
          %s163 = smul.addr %s162, 128
          %s164 = scalar_lea.hbm %s2, %s163
          %s165 = sshll.u32 %s158, 4
          %s166 = int_to_ptr.vmem [resolvable:$true] %s165
          %171 = dma.hbm_to_vmem [thread:$0]  %s164, 384, %s166, %s155, 128, 128, 8
        $region28: #{tpu_custom_call.1} parent=23 // pred_fallthru
          _
      $region24: #{tpu_custom_call.1} parent=5 // pred_fallthru
        _
      %p172 = scmp.le.s32.totalorder 1, %s14
      %p173 = scmp.lt.s32.totalorder %s14, 5
      %p174 = pnand %p172, %p173
      %p175 = pneg %p174
      // Predicated region
      $region29: #{tpu_custom_call.1} parent=5 // pred_check
        _
      $region30: #{tpu_custom_call.1} parent=5 // pred_check_branch
        %177 = sbr.rel (%p174) target = $region32
      $region31: #{tpu_custom_call.1} parent=5 // pred_region
        %s178 = ssub.s32 %s14, 1
        // Predicated region
        $region33: #{tpu_custom_call.1} parent=31 // pred_check
          %p179 = pneg %p35
        $region34: #{tpu_custom_call.1} parent=31 // pred_check_branch
          %181 = sbr.rel (%p179) target = $region36
        $region35: #{tpu_custom_call.1} parent=31 // pred_region
          %182 = dma.done [#allocation3], 128
        $region36: #{tpu_custom_call.1} parent=31 // pred_fallthru
          _
        // Predicated region
        $region37: #{tpu_custom_call.1} parent=31 // pred_check
          %p183 = pneg %p56
        $region38: #{tpu_custom_call.1} parent=31 // pred_check_branch
          %185 = sbr.rel (%p183) target = $region40
        $region39: #{tpu_custom_call.1} parent=31 // pred_region
          %186 = dma.done [#allocation6], 1920
        $region40: #{tpu_custom_call.1} parent=31 // pred_fallthru
          _
        %s187 = sand.u32 %s19, 1
        %s188 = scalar_lea.sflag [#allocation3], %s187
        %s189 = sand.u32 %s69, 1
        %s190 = smul.addr %s189, 24
        %s191 = scalar_lea.vmem [#allocation7], %s190
        // Predicated region
        $region41: #{tpu_custom_call.1} parent=31 // pred_check
          %p192 = pneg %p82
        $region42: #{tpu_custom_call.1} parent=31 // pred_check_branch
          %194 = sbr.rel (%p192) target = $region44
        $region43: #{tpu_custom_call.1} parent=31 // pred_region
          %195 = dma.done %s188, 384
        $region44: #{tpu_custom_call.1} parent=31 // pred_fallthru
          _
        %p196 = pneg %p35
        %p197 = pneg %p32
        %p198 = pneg %p56
        %p199 = pneg %p53
        %s200 = sand.u32 %s19, 1
        %s201 = scalar_lea.sflag [#allocation3], %s200
        %s202 = sand.u32 %s69, 1
        %s203 = smul.addr %s202, 24
        %s204 = scalar_lea.vmem [#allocation7], %s203
        %p205 = pneg %p82
        %p206 = pneg %p79
        %p207 = pneg %p108
        %p208 = pneg %p105
        %s209 = sand.u32 %s95, 1
        %s210 = scalar_lea.sflag [#allocation4], %s209
        %s211 = sand.u32 %s95, 1
        %s212 = smul.addr %s211, 8
        %s213 = scalar_lea.vmem [#allocation8], %s212
        %v214 = vld [vmem:[#allocation2] sm:$0xff]
        %v215 = vld [vmem:[#allocation5] sm:$0xff]
        %v216 = vld [vmem:[#allocation5 + $0x8] sm:$0xff]
        %v217 = vld [vmem:[#allocation5 + $0x10] sm:$0xff]
        %v218 = vld [vmem:[#allocation5 + $0x18] sm:$0xff]
        %v219 = vld [vmem:[#allocation5 + $0x20] sm:$0xff]
        %v220 = vld [vmem:[#allocation5 + $0x28] sm:$0xff]
        %v221 = vld [vmem:[#allocation5 + $0x30] sm:$0xff]
        %v222 = vld [vmem:[#allocation5 + $0x38] sm:$0xff]
        %v223 = vld [vmem:[#allocation5 + $0x40] sm:$0xff]
        %v224 = vld [vmem:[#allocation5 + $0x48] sm:$0xff]
        %v225 = vld [vmem:[#allocation5 + $0x50] sm:$0xff]
        %v226 = vld [vmem:[#allocation5 + $0x58] sm:$0xff]
        %v227 = vld [vmem:[#allocation5 + $0x60] sm:$0xff]
        %v228 = vld [vmem:[#allocation5 + $0x68] sm:$0xff]
        %v229 = vld [vmem:[#allocation5 + $0x70] sm:$0x1]
        %v230 = vld [vmem:[#allocation5 + $0x71] sm:$0x1]
        %v231 = vld [vmem:[#allocation5 + $0x72] sm:$0x1]
        %v232 = vld [vmem:[#allocation5 + $0x73] sm:$0x1]
        %v233 = vld [vmem:[#allocation5 + $0x74] sm:$0x1]
        %v234 = vld [vmem:[#allocation5 + $0x75] sm:$0x1]
        %v235 = vld [vmem:[%s191] sm:$0xff]
        %v236 = vld [vmem:[%s191 + $0x8] sm:$0xff]
        %v237 = vld [vmem:[%s191 + $0x10] sm:$0xff]
        %vm238 = vcmask 130048
        %v240 = vsel %vm238, %v214, 0
        %242 = vmatprep.subr.mxu0 0.0
        %243 = vmatpush1.msra.mxu0 0.0
        %244 = vmatprep.subr.mxu0 0.0
        %245 = vmatpush1.msra.mxu0 0.0
        %246 = vmatprep.subr.mxu0 0.0
        %247 = vmatpush1.msra.mxu0 0.0
        %248 = vmatprep.subr.mxu0 0.0
        %249 = vmatpush1.msra.mxu0 0.0
        %250 = vmatprep.subr.mxu0 0.0
        %251 = vmatpush1.msra.mxu0 0.0
        %252 = vmatprep.subr.mxu0 0.0
        %253 = vmatpush1.msra.mxu0 0.0
        %254 = vmatprep.subr.mxu0 0.0
        %255 = vmatpush1.msra.mxu0 0.0
        %256 = vmatprep.subr.mxu0 0.0
        %257 = vmatpush1.msra.mxu0 0.0
        %258 = vmatprep.subr.mxu0 0.0
        %259 = vmatpush1.msra.mxu0 0.0
        %260 = vmatprep.subr.mxu0 0.0
        %261 = vmatpush1.msra.mxu0 0.0
        %262 = vmatprep.subr.mxu0 0.0
        %263 = vmatpush1.msra.mxu0 0.0
        %264 = vmatprep.subr.mxu0 0.0
        %265 = vmatpush1.msra.mxu0 0.0
        %266 = vmatprep.subr.mxu0 0.0
        %267 = vmatpush1.msra.mxu0 0.0
        %268 = vmatprep.subr.mxu0 0.0
        %269 = vmatpush1.msra.mxu0 0.0
        %270 = vmatprep.subr.mxu0 0.0
        %271 = vmatpush1.msra.mxu0 %v216
        %272 = vmatprep.subr.mxu0 0.0
        %273 = vmatpush1.msra.mxu0 %v215
        %274 = vmatprep.subr.mxu0 0.0
        %275 = vmatpush2.msra.mxu0 0.0
        %276 = vmatprep.subr.mxu0 0.0
        %277 = vmatpush2.msra.mxu0 0.0
        %278 = vmatprep.subr.mxu0 0.0
        %279 = vmatpush2.msra.mxu0 0.0
        %280 = vmatprep.subr.mxu0 0.0
        %281 = vmatpush2.msra.mxu0 0.0
        %282 = vmatprep.subr.mxu0 0.0
        %283 = vmatpush2.msra.mxu0 0.0
        %284 = vmatprep.subr.mxu0 0.0
        %285 = vmatpush2.msra.mxu0 0.0
        %286 = vmatprep.subr.mxu0 0.0
        %287 = vmatpush2.msra.mxu0 0.0
        %288 = vmatprep.subr.mxu0 0.0
        %289 = vmatpush2.msra.mxu0 0.0
        %290 = vmatprep.subr.mxu0 0.0
        %291 = vmatpush2.msra.mxu0 0.0
        %292 = vmatprep.subr.mxu0 0.0
        %293 = vmatpush2.msra.mxu0 0.0
        %294 = vmatprep.subr.mxu0 0.0
        %295 = vmatpush2.msra.mxu0 0.0
        %296 = vmatprep.subr.mxu0 0.0
        %297 = vmatpush2.msra.mxu0 0.0
        %298 = vmatprep.subr.mxu0 0.0
        %299 = vmatpush2.msra.mxu0 0.0
        %300 = vmatprep.subr.mxu0 0.0
        %301 = vmatpush2.msra.mxu0 0.0
        %302 = vmatprep.subr.mxu0 0.0
        %303 = vmatpush2.msra.mxu0 0.0
        %304 = vmatprep.subr.mxu0 0.0
        %305 = vmatpush2.msra.mxu0 0.0
        %306 = vmatprep.mubr.f32.mxu0 0.0
        %307 = vmatmul.mubr.f32.gmra.mxu0 %v240
        %v308 = vpop.f32.mrf.mxu0
        %v309 = vadd.f32 0.0, %v308
        %v310 = vpop.f32.mrf.mxu0
        %311 = vdwg.mxu0
        %vm312 = vcmask 261120
        %v313 = vsel %vm312, %v309, 0.0
        %v314 = vrot.slane %v313, 4
        %v315 = vadd.f32 %v313, %v314
        %v316 = vrot.slane %v315, 2
        %v317 = vadd.f32 %v315, %v316
        %v318 = vrot.slane %v317, 1
        %v319 = vadd.f32 %v317, %v318
        %v320 = vrcp.pop 8.0
        %v321 = vmul.f32 %v319, %v320
        %v322 = vsub.f32 %v309, %v321
        %v323 = vmul.f32 %v322, %v322
        %v324 = vsel %vm312, %v323, 0.0
        %v325 = vrot.slane %v324, 4
        %v326 = vadd.f32 %v324, %v325
        %v327 = vrot.slane %v326, 2
        %v328 = vadd.f32 %v326, %v327
        %v329 = vrot.slane %v328, 1
        %v330 = vadd.f32 %v328, %v329
        %v331 = vmul.f32 %v330, %v320
        %v332 = vadd.f32 %v331, 1e-05
        %v333 = vrsqrt.pop %v332
        %v334 = vmul.f32 %v322, %v333
        %v335 = vlaneseq
        %v336 = vshrl.u32 %v335, 7
        %v337 = vsub.s32 0, %v336
        %v338 = vrot.slane %v229, %v337
        %v339 = vmul.f32 %v334, %v338
        %v340 = vlaneseq
        %v341 = vshrl.u32 %v340, 7
        %v342 = vsub.s32 0, %v341
        %v343 = vrot.slane %v230, %v342
        %v344 = vadd.f32 %v339, %v343
        %v345 = vmax.f32 %v344, 0.0
        %vm346 = vcmp.ge.f32.partialorder %v235, 0.1
        %v347 = vsel %vm346, %v345, 0.0
        %v349 = vsel %vm312, %v347, 0
        %351 = vmatprep.subr.mxu0 0.0
        %352 = vmatpush1.msra.mxu0 0.0
        %353 = vmatprep.subr.mxu0 0.0
        %354 = vmatpush1.msra.mxu0 0.0
        %355 = vmatprep.subr.mxu0 0.0
        %356 = vmatpush1.msra.mxu0 0.0
        %357 = vmatprep.subr.mxu0 0.0
        %358 = vmatpush1.msra.mxu0 0.0
        %359 = vmatprep.subr.mxu0 0.0
        %360 = vmatpush1.msra.mxu0 0.0
        %361 = vmatprep.subr.mxu0 0.0
        %362 = vmatpush1.msra.mxu0 0.0
        %363 = vmatprep.subr.mxu0 0.0
        %364 = vmatpush1.msra.mxu0 0.0
        %365 = vmatprep.subr.mxu0 0.0
        %366 = vmatpush1.msra.mxu0 0.0
        %367 = vmatprep.subr.mxu0 0.0
        %368 = vmatpush1.msra.mxu0 0.0
        %369 = vmatprep.subr.mxu0 0.0
        %370 = vmatpush1.msra.mxu0 0.0
        %371 = vmatprep.subr.mxu0 0.0
        %372 = vmatpush1.msra.mxu0 0.0
        %373 = vmatprep.subr.mxu0 0.0
        %374 = vmatpush1.msra.mxu0 0.0
        %375 = vmatprep.subr.mxu0 0.0
        %376 = vmatpush1.msra.mxu0 %v220
        %377 = vmatprep.subr.mxu0 0.0
        %378 = vmatpush1.msra.mxu0 %v219
        %379 = vmatprep.subr.mxu0 0.0
        %380 = vmatpush1.msra.mxu0 %v218
        %381 = vmatprep.subr.mxu0 0.0
        %382 = vmatpush1.msra.mxu0 %v217
        %383 = vmatprep.subr.mxu0 0.0
        %384 = vmatpush2.msra.mxu0 0.0
        %385 = vmatprep.subr.mxu0 0.0
        %386 = vmatpush2.msra.mxu0 0.0
        %387 = vmatprep.subr.mxu0 0.0
        %388 = vmatpush2.msra.mxu0 0.0
        %389 = vmatprep.subr.mxu0 0.0
        %390 = vmatpush2.msra.mxu0 0.0
        %391 = vmatprep.subr.mxu0 0.0
        %392 = vmatpush2.msra.mxu0 0.0
        %393 = vmatprep.subr.mxu0 0.0
        %394 = vmatpush2.msra.mxu0 0.0
        %395 = vmatprep.subr.mxu0 0.0
        %396 = vmatpush2.msra.mxu0 0.0
        %397 = vmatprep.subr.mxu0 0.0
        %398 = vmatpush2.msra.mxu0 0.0
        %399 = vmatprep.subr.mxu0 0.0
        %400 = vmatpush2.msra.mxu0 0.0
        %401 = vmatprep.subr.mxu0 0.0
        %402 = vmatpush2.msra.mxu0 0.0
        %403 = vmatprep.subr.mxu0 0.0
        %404 = vmatpush2.msra.mxu0 0.0
        %405 = vmatprep.subr.mxu0 0.0
        %406 = vmatpush2.msra.mxu0 0.0
        %407 = vmatprep.subr.mxu0 0.0
        %408 = vmatpush2.msra.mxu0 0.0
        %409 = vmatprep.subr.mxu0 0.0
        %410 = vmatpush2.msra.mxu0 0.0
        %411 = vmatprep.subr.mxu0 0.0
        %412 = vmatpush2.msra.mxu0 0.0
        %413 = vmatprep.subr.mxu0 0.0
        %414 = vmatpush2.msra.mxu0 0.0
        %415 = vmatprep.mubr.f32.mxu0 0.0
        %416 = vmatmul.mubr.f32.gmra.mxu0 %v349
        %v417 = vpop.f32.mrf.mxu0
        %v418 = vadd.f32 0.0, %v417
        %v419 = vpop.f32.mrf.mxu0
        %420 = vdwg.mxu0
        %v421 = vsel %vm312, %v418, 0.0
        %v422 = vrot.slane %v421, 4
        %v423 = vadd.f32 %v421, %v422
        %v424 = vrot.slane %v423, 2
        %v425 = vadd.f32 %v423, %v424
        %v426 = vrot.slane %v425, 1
        %v427 = vadd.f32 %v425, %v426
        %v428 = vmul.f32 %v427, %v320
        %v429 = vsub.f32 %v418, %v428
        %v430 = vmul.f32 %v429, %v429
        %v431 = vsel %vm312, %v430, 0.0
        %v432 = vrot.slane %v431, 4
        %v433 = vadd.f32 %v431, %v432
        %v434 = vrot.slane %v433, 2
        %v435 = vadd.f32 %v433, %v434
        %v436 = vrot.slane %v435, 1
        %v437 = vadd.f32 %v435, %v436
        %v438 = vmul.f32 %v437, %v320
        %v439 = vadd.f32 %v438, 1e-05
        %v440 = vrsqrt.pop %v439
        %v441 = vmul.f32 %v429, %v440
        %v442 = vlaneseq
        %v443 = vshrl.u32 %v442, 7
        %v444 = vsub.s32 0, %v443
        %v445 = vrot.slane %v231, %v444
        %v446 = vmul.f32 %v441, %v445
        %v447 = vlaneseq
        %v448 = vshrl.u32 %v447, 7
        %v449 = vsub.s32 0, %v448
        %v450 = vrot.slane %v232, %v449
        %v451 = vadd.f32 %v446, %v450
        %v452 = vmax.f32 %v451, 0.0
        %vm453 = vcmp.ge.f32.partialorder %v236, 0.1
        %v454 = vsel %vm453, %v452, 0.0
        %v455 = vlaneseq
        %v456 = vshrl.u32 %v455, 7
        %v457 = vsub.s32 0, %v456
        %v458 = vrot.slane %v233, %v457
        %v460 = vsel %vm312, %v454, 0
        %462 = vmatprep.subr.mxu0 0.0
        %463 = vmatpush1.msra.mxu0 0.0
        %464 = vmatprep.subr.mxu0 0.0
        %465 = vmatpush1.msra.mxu0 0.0
        %466 = vmatprep.subr.mxu0 0.0
        %467 = vmatpush1.msra.mxu0 0.0
        %468 = vmatprep.subr.mxu0 0.0
        %469 = vmatpush1.msra.mxu0 0.0
        %470 = vmatprep.subr.mxu0 0.0
        %471 = vmatpush1.msra.mxu0 0.0
        %472 = vmatprep.subr.mxu0 0.0
        %473 = vmatpush1.msra.mxu0 0.0
        %474 = vmatprep.subr.mxu0 0.0
        %475 = vmatpush1.msra.mxu0 0.0
        %476 = vmatprep.subr.mxu0 0.0
        %477 = vmatpush1.msra.mxu0 0.0
        %478 = vmatprep.subr.mxu0 0.0
        %479 = vmatpush1.msra.mxu0 0.0
        %480 = vmatprep.subr.mxu0 0.0
        %481 = vmatpush1.msra.mxu0 0.0
        %482 = vmatprep.subr.mxu0 0.0
        %483 = vmatpush1.msra.mxu0 0.0
        %484 = vmatprep.subr.mxu0 0.0
        %485 = vmatpush1.msra.mxu0 0.0
        %486 = vmatprep.subr.mxu0 0.0
        %487 = vmatpush1.msra.mxu0 %v224
        %488 = vmatprep.subr.mxu0 0.0
        %489 = vmatpush1.msra.mxu0 %v223
        %490 = vmatprep.subr.mxu0 0.0
        %491 = vmatpush1.msra.mxu0 %v222
        %492 = vmatprep.subr.mxu0 0.0
        %493 = vmatpush1.msra.mxu0 %v221
        %494 = vmatprep.subr.mxu0 0.0
        %495 = vmatpush2.msra.mxu0 0.0
        %496 = vmatprep.subr.mxu0 0.0
        %497 = vmatpush2.msra.mxu0 0.0
        %498 = vmatprep.subr.mxu0 0.0
        %499 = vmatpush2.msra.mxu0 0.0
        %500 = vmatprep.subr.mxu0 0.0
        %501 = vmatpush2.msra.mxu0 0.0
        %502 = vmatprep.subr.mxu0 0.0
        %503 = vmatpush2.msra.mxu0 0.0
        %504 = vmatprep.subr.mxu0 0.0
        %505 = vmatpush2.msra.mxu0 0.0
        %506 = vmatprep.subr.mxu0 0.0
        %507 = vmatpush2.msra.mxu0 0.0
        %508 = vmatprep.subr.mxu0 0.0
        %509 = vmatpush2.msra.mxu0 0.0
        %510 = vmatprep.subr.mxu0 0.0
        %511 = vmatpush2.msra.mxu0 0.0
        %512 = vmatprep.subr.mxu0 0.0
        %513 = vmatpush2.msra.mxu0 0.0
        %514 = vmatprep.subr.mxu0 0.0
        %515 = vmatpush2.msra.mxu0 0.0
        %516 = vmatprep.subr.mxu0 0.0
        %517 = vmatpush2.msra.mxu0 0.0
        %518 = vmatprep.subr.mxu0 0.0
        %519 = vmatpush2.msra.mxu0 0.0
        %520 = vmatprep.subr.mxu0 0.0
        %521 = vmatpush2.msra.mxu0 0.0
        %522 = vmatprep.subr.mxu0 0.0
        %523 = vmatpush2.msra.mxu0 0.0
        %524 = vmatprep.subr.mxu0 0.0
        %525 = vmatpush2.msra.mxu0 0.0
        %526 = vmatprep.mubr.f32.mxu0 0.0
        %527 = vmatmul.mubr.f32.gmra.mxu0 %v460
        %v528 = vpop.f32.mrf.mxu0
        %v529 = vadd.f32 %v458, %v528
        %v530 = vpop.f32.mrf.mxu0
        %531 = vdwg.mxu0
        %v532 = vmax.f32 %v529, 0.0
        %vm533 = vcmp.ge.f32.partialorder %v237, 0.1
        %v534 = vsel %vm533, %v532, 0.0
        %v535 = vlaneseq
        %v536 = vshrl.u32 %v535, 7
        %v537 = vsub.s32 0, %v536
        %v538 = vrot.slane %v234, %v537
        %v540 = vsel %vm312, %v534, 0
        %542 = vmatprep.subr.mxu0 0.0
        %543 = vmatpush1.msra.mxu0 0.0
        %544 = vmatprep.subr.mxu0 0.0
        %545 = vmatpush1.msra.mxu0 0.0
        %546 = vmatprep.subr.mxu0 0.0
        %547 = vmatpush1.msra.mxu0 0.0
        %548 = vmatprep.subr.mxu0 0.0
        %549 = vmatpush1.msra.mxu0 0.0
        %550 = vmatprep.subr.mxu0 0.0
        %551 = vmatpush1.msra.mxu0 0.0
        %552 = vmatprep.subr.mxu0 0.0
        %553 = vmatpush1.msra.mxu0 0.0
        %554 = vmatprep.subr.mxu0 0.0
        %555 = vmatpush1.msra.mxu0 0.0
        %556 = vmatprep.subr.mxu0 0.0
        %557 = vmatpush1.msra.mxu0 0.0
        %558 = vmatprep.subr.mxu0 0.0
        %559 = vmatpush1.msra.mxu0 0.0
        %560 = vmatprep.subr.mxu0 0.0
        %561 = vmatpush1.msra.mxu0 0.0
        %562 = vmatprep.subr.mxu0 0.0
        %563 = vmatpush1.msra.mxu0 0.0
        %564 = vmatprep.subr.mxu0 0.0
        %565 = vmatpush1.msra.mxu0 0.0
        %566 = vmatprep.subr.mxu0 0.0
        %567 = vmatpush1.msra.mxu0 %v228
        %568 = vmatprep.subr.mxu0 0.0
        %569 = vmatpush1.msra.mxu0 %v227
        %570 = vmatprep.subr.mxu0 0.0
        %571 = vmatpush1.msra.mxu0 %v226
        %572 = vmatprep.subr.mxu0 0.0
        %573 = vmatpush1.msra.mxu0 %v225
        %574 = vmatprep.subr.mxu0 0.0
        %575 = vmatpush2.msra.mxu0 0.0
        %576 = vmatprep.subr.mxu0 0.0
        %577 = vmatpush2.msra.mxu0 0.0
        %578 = vmatprep.subr.mxu0 0.0
        %579 = vmatpush2.msra.mxu0 0.0
        %580 = vmatprep.subr.mxu0 0.0
        %581 = vmatpush2.msra.mxu0 0.0
        %582 = vmatprep.subr.mxu0 0.0
        %583 = vmatpush2.msra.mxu0 0.0
        %584 = vmatprep.subr.mxu0 0.0
        %585 = vmatpush2.msra.mxu0 0.0
        %586 = vmatprep.subr.mxu0 0.0
        %587 = vmatpush2.msra.mxu0 0.0
        %588 = vmatprep.subr.mxu0 0.0
        %589 = vmatpush2.msra.mxu0 0.0
        %590 = vmatprep.subr.mxu0 0.0
        %591 = vmatpush2.msra.mxu0 0.0
        %592 = vmatprep.subr.mxu0 0.0
        %593 = vmatpush2.msra.mxu0 0.0
        %594 = vmatprep.subr.mxu0 0.0
        %595 = vmatpush2.msra.mxu0 0.0
        %596 = vmatprep.subr.mxu0 0.0
        %597 = vmatpush2.msra.mxu0 0.0
        %598 = vmatprep.subr.mxu0 0.0
        %599 = vmatpush2.msra.mxu0 0.0
        %600 = vmatprep.subr.mxu0 0.0
        %601 = vmatpush2.msra.mxu0 0.0
        %602 = vmatprep.subr.mxu0 0.0
        %603 = vmatpush2.msra.mxu0 0.0
        %604 = vmatprep.subr.mxu0 0.0
        %605 = vmatpush2.msra.mxu0 0.0
        %606 = vmatprep.mubr.f32.mxu0 0.0
        %607 = vmatmul.mubr.f32.gmra.mxu0 %v540
        %v608 = vpop.f32.mrf.mxu0
        %v609 = vadd.f32 %v538, %v608
        %v610 = vpop.f32.mrf.mxu0
        %611 = vdwg.mxu0
        %612 = vst [vmem:[%s213] sm:$0xff] %v609
        %s613 = sand.u32 %s95, 1
        %s614 = scalar_lea.sflag [#allocation4], %s613
        %s615 = sand.u32 %s95, 1
        %s616 = smul.addr %s615, 8
        %s617 = scalar_lea.vmem [#allocation8], %s616
        // Predicated region
        $region45: #{tpu_custom_call.1} parent=31 // pred_check
          %p618 = pneg %p105
        $region46: #{tpu_custom_call.1} parent=31 // pred_check_branch
          %620 = sbr.rel (%p618) target = $region48
        $region47: #{tpu_custom_call.1} parent=31 // pred_region
          %s622 = ssub.s32 128, 128
          %623 = vsyncadd %s614, %s622
          %s624 = smul.addr %s19, 128
          %s625 = scalar_lea.hbm %s3, %s624
          %s627 = sshll.u32 %s617, 4
          %s628 = int_to_ptr.vmem [resolvable:$true] %s627
          %630 = dma.vmem_to_hbm [thread:$0]  %s628, 128, %s625, %s614
        $region48: #{tpu_custom_call.1} parent=31 // pred_fallthru
          _
      $region32: #{tpu_custom_call.1} parent=5 // pred_fallthru
        _
      %p631 = scmp.le.s32.totalorder 2, %s14
      // Predicated region
      $region49: #{tpu_custom_call.1} parent=5 // pred_check
        %p632 = pneg %p631
      $region50: #{tpu_custom_call.1} parent=5 // pred_check_branch
        %634 = sbr.rel (%p632) target = $region52
      $region51: #{tpu_custom_call.1} parent=5 // pred_region
        %s635 = ssub.s32 %s14, 2
        // Predicated region
        $region53: #{tpu_custom_call.1} parent=51 // pred_check
          %p636 = pneg %p111
        $region54: #{tpu_custom_call.1} parent=51 // pred_check_branch
          %638 = sbr.rel (%p636) target = $region56
        $region55: #{tpu_custom_call.1} parent=51 // pred_region
          %s639 = sand.u32 %s96, 1
          %s640 = scalar_lea.sflag [#allocation4], %s639
          %s641 = sand.u32 %s96, 1
          %s642 = smul.addr %s641, 8
          %s643 = scalar_lea.vmem [#allocation8], %s642
          %644 = dma.done %s640, 128
        $region56: #{tpu_custom_call.1} parent=51 // pred_fallthru
          _
      $region52: #{tpu_custom_call.1} parent=5 // pred_fallthru
        _
    $region6: #{tpu_custom_call.1} parent=1 // loop_footer
      %s18 = sadd.s32 1, %s14
    $region7: #{tpu_custom_call.1} parent=1 // loop_footer_branch
      %13 = sbr.rel target = $region3
    $region8: #{tpu_custom_call.1} parent=1 // loop_exit
      _
    %645 = vsyncpa [#allocation3], 1
    %s646 = scalar_lea.sflag [#allocation3], 1
    %647 = vsyncpa %s646, 1
    %648 = vsyncpa [#allocation6], 1
    %649 = vsyncpa [#allocation4], 1
    %s650 = scalar_lea.sflag [#allocation4], 1
    %651 = vsyncpa %s650, 1

</llo_original>
